<compile_context>
chip_gen: v6e
topology: v6e:2x2x1
jax: 0.10.0
libtpu: 0.0.40
codegen_flags: <defaults>
</compile_context>

<pallas_src>
import jax
import jax.numpy as jnp
from jax.experimental import pallas as pl
from jax.experimental.pallas import tpu as pltpu


def _round_up(x, m):
    return ((x + m - 1) // m) * m


def mlp_kernel(x_ref, w1_ref, b1_ref, w2_ref, b2_ref, w3_ref, b3_ref, o_ref):
    # Cast x to bf16 in-kernel (hides under DMA); f32 MXU accumulation.
    x = x_ref[...].astype(jnp.bfloat16)
    # Layer 1: Linear + ReLU  (Dropout -> identity in eval mode)
    h1 = jnp.dot(x, w1_ref[...], preferred_element_type=jnp.float32)
    h1 = jnp.maximum(h1 + b1_ref[...], 0.0)
    # Layer 2: Linear + ReLU  (Dropout -> identity in eval mode)
    h2 = jnp.dot(h1.astype(jnp.bfloat16), w2_ref[...],
                 preferred_element_type=jnp.float32)
    h2 = jnp.maximum(h2 + b2_ref[...], 0.0)
    # Layer 3: Linear (output head)
    out = jnp.dot(h2.astype(jnp.bfloat16), w3_ref[...],
                  preferred_element_type=jnp.float32)
    o_ref[...] = (out + b3_ref[...]).astype(o_ref.dtype)


def prepare_params(params):
    """One-time weight prep (hoisted out of the hot path): bf16 matmul
    operands, f32 biases."""
    return {
        "w1": params["w1"].astype(jnp.bfloat16),
        "w2": params["w2"].astype(jnp.bfloat16),
        "w3": params["w3"].astype(jnp.bfloat16),
        "b1": params["b1"].astype(jnp.float32),
        "b2": params["b2"].astype(jnp.float32),
        "b3": params["b3"].astype(jnp.float32),
    }


def mlp_forward(x, prepped, *, tile_b=2048):
    """x: (B, n_in) f32. prepped: output of prepare_params().
    Returns (B, n_out) f32 logits."""
    B, n_in = x.shape
    h1_dim = prepped["w1"].shape[1]          # 32
    h2_dim = prepped["w2"].shape[1]          # 16
    n_out = prepped["w3"].shape[1]

    # Batch padded only to a multiple of 8 (sublane alignment), and only when
    # needed; no padding copy in the common case.
    b_pad = _round_up(B, 8)
    x_in = x if b_pad == B else jnp.pad(x, ((0, b_pad - B), (0, 0)))

    # tile_b: multiple of 8; cap at ceil(b_pad/2) so the grid stays >= 2 when
    # possible (keeps both v7x TensorCores busy).  Default 2048 fits the v5e
    # 16 MiB scoped-VMEM default; raise (with vmem_limit_bytes) on v6e if the
    # batch is huge and per-step overhead shows up.
    tile_b = _round_up(max(8, min(tile_b, pl.cdiv(b_pad, 2))), 8)
    grid = (pl.cdiv(b_pad, tile_b),)         # ragged last tile is OOB-masked

    out = pl.pallas_call(
        mlp_kernel,
        out_shape=jax.ShapeDtypeStruct((b_pad, n_out), jnp.float32),
        grid=grid,
        in_specs=[
            pl.BlockSpec((tile_b, n_in), lambda i: (i, 0)),      # x tile (f32)
            pl.BlockSpec((n_in, h1_dim), lambda i: (0, 0)),      # w1 (resident)
            pl.BlockSpec((1, h1_dim), lambda i: (0, 0)),         # b1
            pl.BlockSpec((h1_dim, h2_dim), lambda i: (0, 0)),    # w2
            pl.BlockSpec((1, h2_dim), lambda i: (0, 0)),         # b2
            pl.BlockSpec((h2_dim, n_out), lambda i: (0, 0)),     # w3
            pl.BlockSpec((1, n_out), lambda i: (0, 0)),          # b3
        ],
        # Lane-narrow (n_out) output block: last dim equals the full array dim,
        # so no 128-padding is needed and writeback is only n_out*4 B/row.
        out_specs=pl.BlockSpec((tile_b, n_out), lambda i: (i, 0)),
        compiler_params=pltpu.CompilerParams(
            dimension_semantics=("parallel",),
        ),
    )(x_in, prepped["w1"], prepped["b1"], prepped["w2"], prepped["b2"],
      prepped["w3"], prepped["b3"])

    return out if b_pad == B else out[:B]


def init_params(key, n_in, n_out):
    """Deterministic init mimicking PyTorch nn.Linear default
    (U[-1/sqrt(fan_in), 1/sqrt(fan_in)]). Weights stored as
    (in_features, out_features) for the kernel."""
    dims = [(n_in, 32), (32, 16), (16, n_out)]
    params = {}
    keys = jax.random.split(key, 2 * len(dims))
    for i, (fan_in, fan_out) in enumerate(dims):
        bound = 1.0 / (fan_in ** 0.5)
        w = jax.random.uniform(keys[2 * i], (fan_in, fan_out),
                               minval=-bound, maxval=bound, dtype=jnp.float32)
        b = jax.random.uniform(keys[2 * i + 1], (1, fan_out),
                               minval=-bound, maxval=bound, dtype=jnp.float32)
        params[f"w{i + 1}"] = w
        params[f"b{i + 1}"] = b
    return params


def mlp_reference(x, params):
    """Pure-JAX reference with the same bf16-operand / f32-accumulate math."""
    w1 = params["w1"].astype(jnp.bfloat16)
    w2 = params["w2"].astype(jnp.bfloat16)
    w3 = params["w3"].astype(jnp.bfloat16)
    h1 = jnp.dot(x.astype(jnp.bfloat16), w1, preferred_element_type=jnp.float32)
    h1 = jnp.maximum(h1 + params["b1"], 0.0)
    h2 = jnp.dot(h1.astype(jnp.bfloat16), w2, preferred_element_type=jnp.float32)
    h2 = jnp.maximum(h2 + params["b2"], 0.0)
    out = jnp.dot(h2.astype(jnp.bfloat16), w3, preferred_element_type=jnp.float32)
    return out + params["b3"]


if __name__ == "__main__":
    key = jax.random.PRNGKey(0)
    k_x, k_p, k_x2 = jax.random.split(key, 3)

    # Titanic-style small shapes: batch=8, n_in=8 features, n_out=2 classes.
    B, n_in, n_out = 8, 8, 2
    x = jax.random.normal(k_x, (B, n_in), dtype=jnp.float32)
    params = init_params(k_p, n_in, n_out)
    prepped = prepare_params(params)

    out = mlp_forward(x, prepped)
    out = jax.block_until_ready(out)
    ref = mlp_reference(x, params)
    assert out.shape == (B, n_out)
    assert jnp.allclose(out, ref, atol=1e-3, rtol=1e-3), (
        f"max abs err {jnp.max(jnp.abs(out - ref))}")

    # Second check: non-multiple-of-8 batch exercising the ragged-tile path.
    B2 = 100
    x2 = jax.random.normal(k_x2, (B2, n_in), dtype=jnp.float32)
    out2 = jax.block_until_ready(mlp_forward(x2, prepped))
    ref2 = mlp_reference(x2, params)
    assert out2.shape == (B2, n_out)
    assert jnp.allclose(out2, ref2, atol=1e-3, rtol=1e-3), (
        f"max abs err {jnp.max(jnp.abs(out2 - ref2))}")

    # TODO(synk): training-mode Dropout(0.2) would need pltpu.prng_seed /
    # pltpu.prng_random_bits; eval()-mode (identity) is implemented here.
    print("KERNEL_OK")
</pallas_src>

<mosaic_0001>
module attributes {stable_mosaic.version = 11 : i64} {
  func.func @mlp_kernel(%arg0: i32, %arg1: memref<8x8xf32, #tpu.memory_space<vmem>>, %arg2: memref<8x32xbf16, #tpu.memory_space<vmem>>, %arg3: memref<1x32xf32, #tpu.memory_space<vmem>>, %arg4: memref<32x16xbf16, #tpu.memory_space<vmem>>, %arg5: memref<1x16xf32, #tpu.memory_space<vmem>>, %arg6: memref<16x2xbf16, #tpu.memory_space<vmem>>, %arg7: memref<1x2xf32, #tpu.memory_space<vmem>>, %arg8: memref<8x2xf32, #tpu.memory_space<vmem>>) attributes {dimension_semantics = [#tpu.dimension_semantics<parallel>], iteration_bounds = array<i64: 1>, scalar_prefetch = 0 : i64, scratch_operands = 0 : i64, tpu.core_type = #tpu.core_type<tc>, window_params = [{transform_indices = @transform_0, window_bounds = array<i64: 8, 8>}, {pipeline_mode = #tpu.pipeline_mode<synchronous>, transform_indices = @transform_1, window_bounds = array<i64: 8, 32>}, {pipeline_mode = #tpu.pipeline_mode<synchronous>, transform_indices = @transform_2, window_bounds = array<i64: 1, 32>}, {pipeline_mode = #tpu.pipeline_mode<synchronous>, transform_indices = @transform_3, window_bounds = array<i64: 32, 16>}, {pipeline_mode = #tpu.pipeline_mode<synchronous>, transform_indices = @transform_4, window_bounds = array<i64: 1, 16>}, {pipeline_mode = #tpu.pipeline_mode<synchronous>, transform_indices = @transform_5, window_bounds = array<i64: 16, 2>}, {pipeline_mode = #tpu.pipeline_mode<synchronous>, transform_indices = @transform_6, window_bounds = array<i64: 1, 2>}, {transform_indices = @transform_7, window_bounds = array<i64: 8, 2>}]} {
    %c0 = arith.constant 0 : index
    %c0_0 = arith.constant 0 : index
    %0 = vector.load %arg1[%c0, %c0_0] : memref<8x8xf32, #tpu.memory_space<vmem>>, vector<8x8xf32>
    %1 = arith.truncf %0 : vector<8x8xf32> to vector<8x8xbf16>
    %c0_1 = arith.constant 0 : index
    %c0_2 = arith.constant 0 : index
    %2 = vector.load %arg2[%c0_1, %c0_2] : memref<8x32xbf16, #tpu.memory_space<vmem>>, vector<8x32xbf16>
    %cst = arith.constant dense<0.000000e+00> : vector<8x32xf32>
    %3 = tpu.matmul %1, %2, %cst {dimension_numbers = #tpu.dot_dimension_numbers<[1], [0], [0], [1], [0, 0, 1, 1], [], []>} : vector<8x8xbf16>, vector<8x32xbf16>, vector<8x32xf32> -> vector<8x32xf32>
    %c0_3 = arith.constant 0 : index
    %c0_4 = arith.constant 0 : index
    %4 = vector.load %arg3[%c0_3, %c0_4] : memref<1x32xf32, #tpu.memory_space<vmem>>, vector<1x32xf32>
    %5 = vector.broadcast %4 : vector<1x32xf32> to vector<8x32xf32>
    %6 = arith.addf %3, %5 : vector<8x32xf32>
    %cst_5 = arith.constant 0.000000e+00 : f32
    %7 = vector.broadcast %cst_5 : f32 to vector<8x32xf32>
    %8 = arith.maximumf %6, %7 : vector<8x32xf32>
    %9 = arith.truncf %8 : vector<8x32xf32> to vector<8x32xbf16>
    %c0_6 = arith.constant 0 : index
    %c0_7 = arith.constant 0 : index
    %10 = vector.load %arg4[%c0_6, %c0_7] : memref<32x16xbf16, #tpu.memory_space<vmem>>, vector<32x16xbf16>
    %cst_8 = arith.constant dense<0.000000e+00> : vector<8x16xf32>
    %11 = tpu.matmul %9, %10, %cst_8 {dimension_numbers = #tpu.dot_dimension_numbers<[1], [0], [0], [1], [0, 0, 1, 1], [], []>} : vector<8x32xbf16>, vector<32x16xbf16>, vector<8x16xf32> -> vector<8x16xf32>
    %c0_9 = arith.constant 0 : index
    %c0_10 = arith.constant 0 : index
    %12 = vector.load %arg5[%c0_9, %c0_10] : memref<1x16xf32, #tpu.memory_space<vmem>>, vector<1x16xf32>
    %13 = vector.broadcast %12 : vector<1x16xf32> to vector<8x16xf32>
    %14 = arith.addf %11, %13 : vector<8x16xf32>
    %cst_11 = arith.constant 0.000000e+00 : f32
    %15 = vector.broadcast %cst_11 : f32 to vector<8x16xf32>
    %16 = arith.maximumf %14, %15 : vector<8x16xf32>
    %17 = arith.truncf %16 : vector<8x16xf32> to vector<8x16xbf16>
    %c0_12 = arith.constant 0 : index
    %c0_13 = arith.constant 0 : index
    %18 = vector.load %arg6[%c0_12, %c0_13] : memref<16x2xbf16, #tpu.memory_space<vmem>>, vector<16x2xbf16>
    %cst_14 = arith.constant dense<0.000000e+00> : vector<8x2xf32>
    %19 = tpu.matmul %17, %18, %cst_14 {dimension_numbers = #tpu.dot_dimension_numbers<[1], [0], [0], [1], [0, 0, 1, 1], [], []>} : vector<8x16xbf16>, vector<16x2xbf16>, vector<8x2xf32> -> vector<8x2xf32>
    %c0_15 = arith.constant 0 : index
    %c0_16 = arith.constant 0 : index
    %20 = vector.load %arg7[%c0_15, %c0_16] : memref<1x2xf32, #tpu.memory_space<vmem>>, vector<1x2xf32>
    %21 = vector.broadcast %20 : vector<1x2xf32> to vector<8x2xf32>
    %22 = arith.addf %19, %21 : vector<8x2xf32>
    %c0_17 = arith.constant 0 : index
    %c0_18 = arith.constant 0 : index
    %23 = vector.load %arg8[%c0_17, %c0_18] : memref<8x2xf32, #tpu.memory_space<vmem>>, vector<8x2xf32>
    tpu.vector_store %arg8[%c0_17, %c0_18], %22 {strides = array<i32>} : memref<8x2xf32, #tpu.memory_space<vmem>>, vector<8x2xf32>,
    return
  }
  func.func @transform_0(%arg0: i32) -> (i32, i32) {
    %c0_i32 = arith.constant 0 : i32
    %c0_i32_0 = arith.constant 0 : i32
    return %arg0, %c0_i32 : i32, i32
  }
  func.func @transform_1(%arg0: i32) -> (i32, i32) {
    %c0_i32 = arith.constant 0 : i32
    %c0_i32_0 = arith.constant 0 : i32
    %c0_i32_1 = arith.constant 0 : i32
    return %c0_i32, %c0_i32_0 : i32, i32
  }
  func.func @transform_2(%arg0: i32) -> (i32, i32) {
    %c0_i32 = arith.constant 0 : i32
    %c0_i32_0 = arith.constant 0 : i32
    %c0_i32_1 = arith.constant 0 : i32
    return %c0_i32, %c0_i32_0 : i32, i32
  }
  func.func @transform_3(%arg0: i32) -> (i32, i32) {
    %c0_i32 = arith.constant 0 : i32
    %c0_i32_0 = arith.constant 0 : i32
    %c0_i32_1 = arith.constant 0 : i32
    return %c0_i32, %c0_i32_0 : i32, i32
  }
  func.func @transform_4(%arg0: i32) -> (i32, i32) {
    %c0_i32 = arith.constant 0 : i32
    %c0_i32_0 = arith.constant 0 : i32
    %c0_i32_1 = arith.constant 0 : i32
    return %c0_i32, %c0_i32_0 : i32, i32
  }
  func.func @transform_5(%arg0: i32) -> (i32, i32) {
    %c0_i32 = arith.constant 0 : i32
    %c0_i32_0 = arith.constant 0 : i32
    %c0_i32_1 = arith.constant 0 : i32
    return %c0_i32, %c0_i32_0 : i32, i32
  }
  func.func @transform_6(%arg0: i32) -> (i32, i32) {
    %c0_i32 = arith.constant 0 : i32
    %c0_i32_0 = arith.constant 0 : i32
    %c0_i32_1 = arith.constant 0 : i32
    return %c0_i32, %c0_i32_0 : i32, i32
  }
  func.func @transform_7(%arg0: i32) -> (i32, i32) {
    %c0_i32 = arith.constant 0 : i32
    %c0_i32_0 = arith.constant 0 : i32
    return %arg0, %c0_i32 : i32, i32
  }
}

</mosaic_0001>

<llo_original>
// kernel: tpu_custom_call.1
$region0: #{tpu_custom_call.1}
  #allocation0 [shape = 'u32[]', space=smem, size = 0x4, offset = 0x4, fixed_abs, tag = 'smem constant byte address 0x4 - core index']
  #allocation1 [shape = 'u32[144,128]{1,0:T(1,128)}', space=vmem, size = 0x12000, scoped, tag = 'internal scratch']
  %s0 = inlined_call_operand.vmem [shape: f32[8,8], index: 0, kind: input, shape index: {}]
  %s1 = inlined_call_operand.vmem [shape: bf16[8,32], index: 1, kind: input, shape index: {}]
  %s2 = inlined_call_operand.vmem [shape: f32[1,32], index: 2, kind: input, shape index: {}]
  %s3 = inlined_call_operand.vmem [shape: bf16[32,16], index: 3, kind: input, shape index: {}]
  %s4 = inlined_call_operand.vmem [shape: f32[1,16], index: 4, kind: input, shape index: {}]
  %s5 = inlined_call_operand.vmem [shape: bf16[16,2], index: 5, kind: input, shape index: {}]
  %s6 = inlined_call_operand.vmem [shape: f32[1,2], index: 6, kind: input, shape index: {}]
  %s7 = inlined_call_operand.vmem [shape: f32[8,2], index: 7, kind: output, shape index: {}]
  %s8 = sld [smem:[#allocation0]]
  $region38: #{tpu_custom_call.1} parent=0
    _
  %s10 = ssub.s32 1, %s8
  %s11 = scalar_select 0, %s10, %s8
  // Predicated region
  $region2: #{tpu_custom_call.1} parent=0 // pred_check
    _
  $region3: #{tpu_custom_call.1} parent=0 // pred_check_branch
    %13 = sbr.rel (0) target = $region5
  $region4: #{tpu_custom_call.1} parent=0 // pred_region
    _
  $region5: #{tpu_custom_call.1} parent=0 // pred_fallthru
    _
  // Predicated region
  $region6: #{tpu_custom_call.1} parent=0 // pred_check
    _
  $region7: #{tpu_custom_call.1} parent=0 // pred_check_branch
    %15 = sbr.rel (0) target = $region9
  $region8: #{tpu_custom_call.1} parent=0 // pred_region
    _
  $region9: #{tpu_custom_call.1} parent=0 // pred_fallthru
    _
  // Predicated region
  $region10: #{tpu_custom_call.1} parent=0 // pred_check
    _
  $region11: #{tpu_custom_call.1} parent=0 // pred_check_branch
    %17 = sbr.rel (0) target = $region13
  $region12: #{tpu_custom_call.1} parent=0 // pred_region
    _
  $region13: #{tpu_custom_call.1} parent=0 // pred_fallthru
    _
  // Predicated region
  $region14: #{tpu_custom_call.1} parent=0 // pred_check
    _
  $region15: #{tpu_custom_call.1} parent=0 // pred_check_branch
    %19 = sbr.rel (0) target = $region17
  $region16: #{tpu_custom_call.1} parent=0 // pred_region
    _
  $region17: #{tpu_custom_call.1} parent=0 // pred_fallthru
    _
  // Predicated region
  $region18: #{tpu_custom_call.1} parent=0 // pred_check
    _
  $region19: #{tpu_custom_call.1} parent=0 // pred_check_branch
    %21 = sbr.rel (0) target = $region21
  $region20: #{tpu_custom_call.1} parent=0 // pred_region
    _
  $region21: #{tpu_custom_call.1} parent=0 // pred_fallthru
    _
  // Predicated region
  $region22: #{tpu_custom_call.1} parent=0 // pred_check
    _
  $region23: #{tpu_custom_call.1} parent=0 // pred_check_branch
    %23 = sbr.rel (0) target = $region25
  $region24: #{tpu_custom_call.1} parent=0 // pred_region
    _
  $region25: #{tpu_custom_call.1} parent=0 // pred_fallthru
    _
  // Predicated region
  $region26: #{tpu_custom_call.1} parent=0 // pred_check
    _
  $region27: #{tpu_custom_call.1} parent=0 // pred_check_branch
    %25 = sbr.rel (0) target = $region29
  $region28: #{tpu_custom_call.1} parent=0 // pred_region
    _
  $region29: #{tpu_custom_call.1} parent=0 // pred_fallthru
    _
  %v27 = vld [vmem:[%s0] sm:$0xff]
  %v28 = vpack.c.bf16 %v27, %v27
  %v29 = vld [vmem:[%s1] sm:$0xf]
  %v30 = vld [vmem:[%s2] sm:$0x1]
  %v32 = vlaneseq
  %v33 = vshrl.u32 %v32, 7
  %v34 = vsub.s32 0, %v33
  %v35 = vrot.slane %v30, %v34
  %vm37 = vcmask 64512
  %v39 = vsel %vm37, %v28, 0
  %vm41 = vcmask 1043456
  %v43 = vsel %vm41, %v29, 0
  %45 = vmatprep.subr.bf16.mxu0 0
  %46 = vmatpush1.bf16.msra.mxu0 0
  %47 = vmatprep.subr.bf16.mxu0 0
  %48 = vmatpush1.bf16.msra.mxu0 0
  %49 = vmatprep.subr.bf16.mxu0 0
  %50 = vmatpush1.bf16.msra.mxu0 0
  %51 = vmatprep.subr.bf16.mxu0 0
  %52 = vmatpush1.bf16.msra.mxu0 0
  %53 = vmatprep.subr.bf16.mxu0 0
  %54 = vmatpush1.bf16.msra.mxu0 0
  %55 = vmatprep.subr.bf16.mxu0 0
  %56 = vmatpush1.bf16.msra.mxu0 0
  %57 = vmatprep.subr.bf16.mxu0 0
  %58 = vmatpush1.bf16.msra.mxu0 0
  %59 = vmatprep.subr.bf16.mxu0 0
  %60 = vmatpush1.bf16.msra.mxu0 %v43
  %61 = vmatprep.subr.bf16.mxu0 0
  %62 = vmatpush2.bf16.msra.mxu0 0
  %63 = vmatprep.subr.bf16.mxu0 0
  %64 = vmatpush2.bf16.msra.mxu0 0
  %65 = vmatprep.subr.bf16.mxu0 0
  %66 = vmatpush2.bf16.msra.mxu0 0
  %67 = vmatprep.subr.bf16.mxu0 0
  %68 = vmatpush2.bf16.msra.mxu0 0
  %69 = vmatprep.subr.bf16.mxu0 0
  %70 = vmatpush2.bf16.msra.mxu0 0
  %71 = vmatprep.subr.bf16.mxu0 0
  %72 = vmatpush2.bf16.msra.mxu0 0
  %73 = vmatprep.subr.bf16.mxu0 0
  %74 = vmatpush2.bf16.msra.mxu0 0
  %75 = vmatprep.subr.bf16.mxu0 0
  %76 = vmatpush2.bf16.msra.mxu0 0
  %77 = vmatprep.mubr.bf16.mxu0 0
  %78 = vmatmul.mubr.bf16.gmra.mxu0 %v39
  %v79 = vpop.f32.mrf.mxu0
  %v80 = vadd.f32 %v35, %v79
  %v81 = vpop.f32.mrf.mxu0
  %v82 = vpop.f32.mrf.mxu0
  %v83 = vpop.f32.mrf.mxu0
  %84 = vdwg.mxu0
  %v85 = vmax.f32 %v80, 0.0
  %v86 = vpack.c.bf16 %v85, %v85
  %v87 = vld [vmem:[%s3] sm:$0xf]
  %v88 = vld [vmem:[%s3 + $0x4] sm:$0xf]
  %v89 = vld [vmem:[%s3 + $0x8] sm:$0xf]
  %v90 = vld [vmem:[%s3 + $0xc] sm:$0xf]
  %v91 = vld [vmem:[%s4] sm:$0x1]
  %v93 = vlaneseq
  %v94 = vshrl.u32 %v93, 7
  %v95 = vsub.s32 0, %v94
  %v96 = vrot.slane %v91, %v95
  %v102 = vunpack.c.l.b16 %v87
  %v103 = vunpack.c.l.b16 %v88
  %v104 = vunpack.c.l.b16 %v89
  %v105 = vunpack.c.l.b16 %v90
  %v106 = vpack.c.b16 %v103, %v102
  %v107 = vpack.c.b16 %v105, %v104
  %vm110 = vcmask 261120
  %v112 = vsel %vm110, %v86, 0
  %114 = vmatprep.subr.bf16.mxu0 0
  %115 = vmatpush1.bf16.msra.mxu0 0
  %116 = vmatprep.subr.bf16.mxu0 0
  %117 = vmatpush1.bf16.msra.mxu0 0
  %118 = vmatprep.subr.bf16.mxu0 0
  %119 = vmatpush1.bf16.msra.mxu0 0
  %120 = vmatprep.subr.bf16.mxu0 0
  %121 = vmatpush1.bf16.msra.mxu0 0
  %122 = vmatprep.subr.bf16.mxu0 0
  %123 = vmatpush1.bf16.msra.mxu0 0
  %124 = vmatprep.subr.bf16.mxu0 0
  %125 = vmatpush1.bf16.msra.mxu0 0
  %126 = vmatprep.subr.bf16.mxu0 0
  %127 = vmatpush1.bf16.msra.mxu0 %v107
  %128 = vmatprep.subr.bf16.mxu0 0
  %129 = vmatpush1.bf16.msra.mxu0 %v106
  %130 = vmatprep.subr.bf16.mxu0 0
  %131 = vmatpush2.bf16.msra.mxu0 0
  %132 = vmatprep.subr.bf16.mxu0 0
  %133 = vmatpush2.bf16.msra.mxu0 0
  %134 = vmatprep.subr.bf16.mxu0 0
  %135 = vmatpush2.bf16.msra.mxu0 0
  %136 = vmatprep.subr.bf16.mxu0 0
  %137 = vmatpush2.bf16.msra.mxu0 0
  %138 = vmatprep.subr.bf16.mxu0 0
  %139 = vmatpush2.bf16.msra.mxu0 0
  %140 = vmatprep.subr.bf16.mxu0 0
  %141 = vmatpush2.bf16.msra.mxu0 0
  %142 = vmatprep.subr.bf16.mxu0 0
  %143 = vmatpush2.bf16.msra.mxu0 0
  %144 = vmatprep.subr.bf16.mxu0 0
  %145 = vmatpush2.bf16.msra.mxu0 0
  %146 = vmatprep.mubr.bf16.mxu0 0
  %147 = vmatmul.mubr.bf16.gmra.mxu0 %v112
  %v148 = vpop.f32.mrf.mxu0
  %v149 = vadd.f32 %v96, %v148
  %v150 = vpop.f32.mrf.mxu0
  %v151 = vpop.f32.mrf.mxu0
  %v152 = vpop.f32.mrf.mxu0
  %153 = vdwg.mxu0
  %v154 = vmax.f32 %v149, 0.0
  %v155 = vpack.c.bf16 %v154, %v154
  %v156 = vld [vmem:[%s5] sm:$0xf]
  %v157 = vld [vmem:[%s5 + $0x4] sm:$0xf]
  %v158 = vld [vmem:[%s6] sm:$0x1]
  %v160 = vlaneseq
  %v161 = vshrl.u32 %v160, 7
  %v162 = vsub.s32 0, %v161
  %v163 = vrot.slane %v158, %v162
  %v167 = vunpack.c.l.b16 %v156
  %v168 = vunpack.c.l.b16 %v157
  %v169 = vpack.c.b16 %v168, %v167
  %vm171 = vcmask 130048
  %v173 = vsel %vm171, %v155, 0
  %175 = vmatprep.subr.bf16.mxu0 0
  %176 = vmatpush1.bf16.msra.mxu0 0
  %177 = vmatprep.subr.bf16.mxu0 0
  %178 = vmatpush1.bf16.msra.mxu0 0
  %179 = vmatprep.subr.bf16.mxu0 0
  %180 = vmatpush1.bf16.msra.mxu0 0
  %181 = vmatprep.subr.bf16.mxu0 0
  %182 = vmatpush1.bf16.msra.mxu0 0
  %183 = vmatprep.subr.bf16.mxu0 0
  %184 = vmatpush1.bf16.msra.mxu0 0
  %185 = vmatprep.subr.bf16.mxu0 0
  %186 = vmatpush1.bf16.msra.mxu0 0
  %187 = vmatprep.subr.bf16.mxu0 0
  %188 = vmatpush1.bf16.msra.mxu0 0
  %189 = vmatprep.subr.bf16.mxu0 0
  %190 = vmatpush1.bf16.msra.mxu0 %v169
  %191 = vmatprep.subr.bf16.mxu0 0
  %192 = vmatpush2.bf16.msra.mxu0 0
  %193 = vmatprep.subr.bf16.mxu0 0
  %194 = vmatpush2.bf16.msra.mxu0 0
  %195 = vmatprep.subr.bf16.mxu0 0
  %196 = vmatpush2.bf16.msra.mxu0 0
  %197 = vmatprep.subr.bf16.mxu0 0
  %198 = vmatpush2.bf16.msra.mxu0 0
  %199 = vmatprep.subr.bf16.mxu0 0
  %200 = vmatpush2.bf16.msra.mxu0 0
  %201 = vmatprep.subr.bf16.mxu0 0
  %202 = vmatpush2.bf16.msra.mxu0 0
  %203 = vmatprep.subr.bf16.mxu0 0
  %204 = vmatpush2.bf16.msra.mxu0 0
  %205 = vmatprep.subr.bf16.mxu0 0
  %206 = vmatpush2.bf16.msra.mxu0 0
  %207 = vmatprep.mubr.bf16.mxu0 0
  %208 = vmatmul.mubr.bf16.gmra.mxu0 %v173
  %v209 = vpop.f32.mrf.mxu0
  %v210 = vadd.f32 %v163, %v209
  %v211 = vpop.f32.mrf.mxu0
  %v212 = vpop.f32.mrf.mxu0
  %v213 = vpop.f32.mrf.mxu0
  %214 = vdwg.mxu0
  %vm215 = vcmask 15360
  %216 = vst.msk [vmem:[%s7] sm:$0xff] %vm215, %v210
  // Predicated region
  $region30: #{tpu_custom_call.1} parent=0 // pred_check
    _
  $region31: #{tpu_custom_call.1} parent=0 // pred_check_branch
    %218 = sbr.rel (0) target = $region33
  $region32: #{tpu_custom_call.1} parent=0 // pred_region
    _
  $region33: #{tpu_custom_call.1} parent=0 // pred_fallthru
    _
  // Predicated region
  $region34: #{tpu_custom_call.1} parent=0 // pred_check
    _
  $region35: #{tpu_custom_call.1} parent=0 // pred_check_branch
    %220 = sbr.rel (0) target = $region37
  $region36: #{tpu_custom_call.1} parent=0 // pred_region
    _
  $region37: #{tpu_custom_call.1} parent=0 // pred_fallthru
    _

</llo_original>
